<compile_context>
chip_gen: v7x
topology: tpu7x:2x2x1
jax: 0.10.0
libtpu: 0.0.40
codegen_flags: <defaults>
</compile_context>

<pallas_src>
import jax
import jax.numpy as jnp
from jax.experimental import pallas as pl
from jax.experimental.pallas import tpu as pltpu


def _round_up(a, b):
    return -(-a // b) * b


def _pick_chunk(tm):
    """Largest sub-chunk <= 512 columns that evenly divides the tile."""
    if tm <= 512:
        return tm
    for c in (512, 256, 128):
        if tm % c == 0:
            return c
    return tm  # unreachable: tm is always a multiple of 128


def _pick_tile_m(m_pad, requested):
    """Row tile: multiple of 128, <= m_pad, preferring >=2 (and even) steps."""
    t = min(_round_up(max(requested, 128), 128), m_pad)
    steps = -(-m_pad // t)
    if steps == 1 and m_pad >= 256:
        # split a single big block in two so both TensorCores get work (v7x)
        t = _round_up(-(-m_pad // 2), 128)
    elif steps > 1 and steps % 2 == 1:
        # soft preference for an even step count (v7x megacore tail balance)
        t2 = _round_up(-(-m_pad // (steps + 1)), 128)
        if (-(-m_pad // t2)) % 2 == 0:
            t = t2
    return t


def _mlp_kernel(xin_ref, w1_ref, b1_ref, w2_ref, b2_ref, w3_ref, b3_ref, o_ref):
    # Feature-major tiles: xin_ref is (D, tm); weights keep the PyTorch
    # (out, in) layout so no transposes are needed anywhere.
    tm = xin_ref.shape[1]
    chunk = _pick_chunk(tm)
    n_chunks = tm // chunk

    w1 = w1_ref[...]          # (H, D)  bf16
    b1 = b1_ref[...]          # (H, 1)  f32
    w2 = w2_ref[...]          # (H, H)  bf16
    b2 = b2_ref[...]          # (H, 1)  f32
    w3 = w3_ref[...]          # (1, H)  bf16
    b3 = b3_ref[...]          # (1, 1)  f32

    def body(c, carry):
        j = pl.multiple_of(c * chunk, 128)
        xin = xin_ref[:, pl.ds(j, chunk)]                      # (D, chunk) bf16
        h1 = jnp.dot(w1, xin, preferred_element_type=jnp.float32) + b1
        h1 = jnp.maximum(h1, 0.0).astype(jnp.bfloat16)         # (H, chunk)
        h2 = jnp.dot(w2, h1, preferred_element_type=jnp.float32) + b2
        h2 = jnp.maximum(h2, 0.0).astype(jnp.bfloat16)         # (H, chunk)
        o_ref[:, pl.ds(j, chunk)] = (
            jnp.dot(w3, h2, preferred_element_type=jnp.float32) + b3)  # (1, chunk)
        return carry

    jax.lax.fori_loop(0, n_chunks, body, None, unroll=True)


def sdf_regression_forward(x, latent, params, *, tile_m=8192):
    """x: (B, N, input_dim), latent: (B, N, latent_dim). Returns (B, N, 1)."""
    B, N, d_in = x.shape
    d_lat = latent.shape[-1]
    D = d_in + d_lat
    M = B * N

    M_pad = _round_up(M, 128)          # pad only to the lane width, not to tm
    tm = _pick_tile_m(M_pad, tile_m)
    grid = (-(-M_pad // tm),)          # ragged last block handled by Pallas

    # ONE fused pass: reshape + transpose + cast + concat + pad producing the
    # (D, M_pad) bf16 feature-major input slab (x features, then latent).
    xT = x.reshape(M, d_in).T.astype(jnp.bfloat16)       # (d_in, M)
    latT = latent.reshape(M, d_lat).T.astype(jnp.bfloat16)
    xinT = jnp.concatenate((xT, latT), axis=0)           # (D, M)
    if M_pad != M:
        xinT = jnp.pad(xinT, ((0, 0), (0, M_pad - M)))   # (D, M_pad)

    # Weights stay in PyTorch (out, in) layout; W1 is used unsplit.
    H = params["fc1_w"].shape[0]
    w1 = params["fc1_w"].astype(jnp.bfloat16)            # (H, D)
    b1 = params["fc1_b"].reshape(H, 1).astype(jnp.float32)
    w2 = params["fc2_w"].astype(jnp.bfloat16)            # (H, H)
    b2 = params["fc2_b"].reshape(H, 1).astype(jnp.float32)
    w3 = params["fc3_w"].astype(jnp.bfloat16)            # (1, H)
    b3 = params["fc3_b"].reshape(1, 1).astype(jnp.float32)

    outT = pl.pallas_call(
        _mlp_kernel,
        out_shape=jax.ShapeDtypeStruct((1, M_pad), jnp.float32),
        grid_spec=pltpu.PrefetchScalarGridSpec(
            num_scalar_prefetch=0,
            grid=grid,
            in_specs=[
                pl.BlockSpec((D, tm), lambda i: (0, i)),   # fused input slab
                pl.BlockSpec((H, D), lambda i: (0, 0)),    # W1
                pl.BlockSpec((H, 1), lambda i: (0, 0)),    # b1
                pl.BlockSpec((H, H), lambda i: (0, 0)),    # W2
                pl.BlockSpec((H, 1), lambda i: (0, 0)),    # b2
                pl.BlockSpec((1, H), lambda i: (0, 0)),    # W3
                pl.BlockSpec((1, 1), lambda i: (0, 0)),    # b3
            ],
            out_specs=pl.BlockSpec((1, tm), lambda i: (0, i)),  # lane-dense out
        ),
        compiler_params=pltpu.CompilerParams(
            dimension_semantics=("parallel",),
            vmem_limit_bytes=32 * 1024 * 1024),
    )(xinT, w1, b1, w2, b2, w3, b3)

    return outT[0, :M].reshape(B, N, 1)


def _init_params(key, input_dim, latent_dim, hidden_dim):
    d_in = input_dim + latent_dim
    ks = jax.random.split(key, 6)

    def uniform(k, shape, fan_in):
        bound = 1.0 / jnp.sqrt(fan_in)
        return jax.random.uniform(k, shape, jnp.float32, -bound, bound)

    return {
        "fc1_w": uniform(ks[0], (hidden_dim, d_in), d_in),
        "fc1_b": uniform(ks[1], (hidden_dim,), d_in),
        "fc2_w": uniform(ks[2], (hidden_dim, hidden_dim), hidden_dim),
        "fc2_b": uniform(ks[3], (hidden_dim,), hidden_dim),
        "fc3_w": uniform(ks[4], (1, hidden_dim), hidden_dim),
        "fc3_b": uniform(ks[5], (1,), hidden_dim),
    }


def _reference_forward(x, latent, params):
    xin = jnp.concatenate((x, latent), axis=2)
    h = jnp.maximum(xin @ params["fc1_w"].T + params["fc1_b"], 0.0)
    h = jnp.maximum(h @ params["fc2_w"].T + params["fc2_b"], 0.0)
    return h @ params["fc3_w"].T + params["fc3_b"]


if __name__ == "__main__":
    input_dim, latent_dim, hidden_dim = 3, 29, 32

    key = jax.random.PRNGKey(0)
    kp, kd = jax.random.split(key)
    params = _init_params(kp, input_dim, latent_dim, hidden_dim)

    fwd = jax.jit(sdf_regression_forward)

    # Case 1: tiny shape (single padded tile). Case 2: non-multiple row count
    # exercising the 128-padding + a 2-step grid.
    for (B, N) in [(2, 8), (2, 200)]:
        kx, kl, kd = jax.random.split(kd, 3)
        x = jax.random.normal(kx, (B, N, input_dim), jnp.float32)
        latent = jax.random.normal(kl, (B, N, latent_dim), jnp.float32)

        out = jax.block_until_ready(fwd(x, latent, params))
        ref = _reference_forward(x, latent, params)

        assert out.shape == (B, N, 1)
        # bf16 inputs/weights with f32 accumulation -> loosened tolerance.
        assert jnp.allclose(out, ref, atol=5e-2, rtol=5e-2), (
            float(jnp.max(jnp.abs(out - ref))))

    print("KERNEL_OK")
</pallas_src>

<mosaic_0001>
module attributes {stable_mosaic.version = 11 : i64} {
  func.func @_mlp_kernel(%arg0: i32, %arg1: memref<32x128xbf16, #tpu.memory_space<vmem>>, %arg2: memref<32x32xbf16, #tpu.memory_space<vmem>>, %arg3: memref<32x1xf32, #tpu.memory_space<vmem>>, %arg4: memref<32x32xbf16, #tpu.memory_space<vmem>>, %arg5: memref<32x1xf32, #tpu.memory_space<vmem>>, %arg6: memref<1x32xbf16, #tpu.memory_space<vmem>>, %arg7: memref<1x1xf32, #tpu.memory_space<vmem>>, %arg8: memref<1x128xf32, #tpu.memory_space<vmem>>) attributes {dimension_semantics = [#tpu.dimension_semantics<parallel>], iteration_bounds = array<i64: 1>, scalar_prefetch = 0 : i64, scratch_operands = 0 : i64, tpu.core_type = #tpu.core_type<tc>, window_params = [{transform_indices = @transform_0, window_bounds = array<i64: 32, 128>}, {pipeline_mode = #tpu.pipeline_mode<synchronous>, transform_indices = @transform_1, window_bounds = array<i64: 32, 32>}, {pipeline_mode = #tpu.pipeline_mode<synchronous>, transform_indices = @transform_2, window_bounds = array<i64: 32, 1>}, {pipeline_mode = #tpu.pipeline_mode<synchronous>, transform_indices = @transform_3, window_bounds = array<i64: 32, 32>}, {pipeline_mode = #tpu.pipeline_mode<synchronous>, transform_indices = @transform_4, window_bounds = array<i64: 32, 1>}, {pipeline_mode = #tpu.pipeline_mode<synchronous>, transform_indices = @transform_5, window_bounds = array<i64: 1, 32>}, {pipeline_mode = #tpu.pipeline_mode<synchronous>, transform_indices = @transform_6, window_bounds = array<i64: 1, 1>}, {transform_indices = @transform_7, window_bounds = array<i64: 1, 128>}]} {
    %c0 = arith.constant 0 : index
    %c0_0 = arith.constant 0 : index
    %0 = vector.load %arg2[%c0, %c0_0] : memref<32x32xbf16, #tpu.memory_space<vmem>>, vector<32x32xbf16>
    %c0_1 = arith.constant 0 : index
    %c0_2 = arith.constant 0 : index
    %1 = vector.load %arg3[%c0_1, %c0_2] : memref<32x1xf32, #tpu.memory_space<vmem>>, vector<32x1xf32>
    %c0_3 = arith.constant 0 : index
    %c0_4 = arith.constant 0 : index
    %2 = vector.load %arg4[%c0_3, %c0_4] : memref<32x32xbf16, #tpu.memory_space<vmem>>, vector<32x32xbf16>
    %c0_5 = arith.constant 0 : index
    %c0_6 = arith.constant 0 : index
    %3 = vector.load %arg5[%c0_5, %c0_6] : memref<32x1xf32, #tpu.memory_space<vmem>>, vector<32x1xf32>
    %c0_7 = arith.constant 0 : index
    %c0_8 = arith.constant 0 : index
    %4 = vector.load %arg6[%c0_7, %c0_8] : memref<1x32xbf16, #tpu.memory_space<vmem>>, vector<1x32xbf16>
    %c0_9 = arith.constant 0 : index
    %c0_10 = arith.constant 0 : index
    %5 = vector.load %arg7[%c0_9, %c0_10] : memref<1x1xf32, #tpu.memory_space<vmem>>, vector<1x1xf32>
    %c0_i32 = arith.constant 0 : i32
    %c128_i32 = arith.constant 128 : i32
    %6 = arith.muli %c0_i32, %c128_i32 : i32
    %7 = tpu.assume_multiple %6, 128 : i32
    %c0_11 = arith.constant 0 : index
    %8 = arith.index_cast %7 : i32 to index
    %9 = vector.load %arg1[%c0_11, %8] : memref<32x128xbf16, #tpu.memory_space<vmem>>, vector<32x128xbf16>
    %cst = arith.constant dense<0.000000e+00> : vector<32x128xf32>
    %10 = tpu.matmul %0, %9, %cst {dimension_numbers = #tpu.dot_dimension_numbers<[1], [0], [0], [1], [0, 0, 1, 1], [], []>} : vector<32x32xbf16>, vector<32x128xbf16>, vector<32x128xf32> -> vector<32x128xf32>
    %11 = vector.broadcast %1 : vector<32x1xf32> to vector<32x128xf32>
    %12 = arith.addf %10, %11 : vector<32x128xf32>
    %cst_12 = arith.constant 0.000000e+00 : f32
    %13 = vector.broadcast %cst_12 : f32 to vector<32x128xf32>
    %14 = arith.maximumf %12, %13 : vector<32x128xf32>
    %15 = arith.truncf %14 : vector<32x128xf32> to vector<32x128xbf16>
    %cst_13 = arith.constant dense<0.000000e+00> : vector<32x128xf32>
    %16 = tpu.matmul %2, %15, %cst_13 {dimension_numbers = #tpu.dot_dimension_numbers<[1], [0], [0], [1], [0, 0, 1, 1], [], []>} : vector<32x32xbf16>, vector<32x128xbf16>, vector<32x128xf32> -> vector<32x128xf32>
    %17 = vector.broadcast %3 : vector<32x1xf32> to vector<32x128xf32>
    %18 = arith.addf %16, %17 : vector<32x128xf32>
    %cst_14 = arith.constant 0.000000e+00 : f32
    %19 = vector.broadcast %cst_14 : f32 to vector<32x128xf32>
    %20 = arith.maximumf %18, %19 : vector<32x128xf32>
    %21 = arith.truncf %20 : vector<32x128xf32> to vector<32x128xbf16>
    %cst_15 = arith.constant dense<0.000000e+00> : vector<1x128xf32>
    %22 = tpu.matmul %4, %21, %cst_15 {dimension_numbers = #tpu.dot_dimension_numbers<[1], [0], [0], [1], [0, 0, 1, 1], [], []>} : vector<1x32xbf16>, vector<32x128xbf16>, vector<1x128xf32> -> vector<1x128xf32>
    %23 = vector.broadcast %5 : vector<1x1xf32> to vector<1x128xf32>
    %24 = arith.addf %22, %23 : vector<1x128xf32>
    %c0_16 = arith.constant 0 : index
    %25 = arith.index_cast %7 : i32 to index
    %26 = vector.load %arg8[%c0_16, %25] : memref<1x128xf32, #tpu.memory_space<vmem>>, vector<1x128xf32>
    tpu.vector_store %arg8[%c0_16, %25], %24 {strides = array<i32>} : memref<1x128xf32, #tpu.memory_space<vmem>>, vector<1x128xf32>,
    %c1_i32 = arith.constant 1 : i32
    return
  }
  func.func @transform_0(%arg0: i32) -> (i32, i32) {
    %c0_i32 = arith.constant 0 : i32
    %c0_i32_0 = arith.constant 0 : i32
    return %c0_i32, %arg0 : i32, i32
  }
  func.func @transform_1(%arg0: i32) -> (i32, i32) {
    %c0_i32 = arith.constant 0 : i32
    %c0_i32_0 = arith.constant 0 : i32
    %c0_i32_1 = arith.constant 0 : i32
    return %c0_i32, %c0_i32_0 : i32, i32
  }
  func.func @transform_2(%arg0: i32) -> (i32, i32) {
    %c0_i32 = arith.constant 0 : i32
    %c0_i32_0 = arith.constant 0 : i32
    %c0_i32_1 = arith.constant 0 : i32
    return %c0_i32, %c0_i32_0 : i32, i32
  }
  func.func @transform_3(%arg0: i32) -> (i32, i32) {
    %c0_i32 = arith.constant 0 : i32
    %c0_i32_0 = arith.constant 0 : i32
    %c0_i32_1 = arith.constant 0 : i32
    return %c0_i32, %c0_i32_0 : i32, i32
  }
  func.func @transform_4(%arg0: i32) -> (i32, i32) {
    %c0_i32 = arith.constant 0 : i32
    %c0_i32_0 = arith.constant 0 : i32
    %c0_i32_1 = arith.constant 0 : i32
    return %c0_i32, %c0_i32_0 : i32, i32
  }
  func.func @transform_5(%arg0: i32) -> (i32, i32) {
    %c0_i32 = arith.constant 0 : i32
    %c0_i32_0 = arith.constant 0 : i32
    %c0_i32_1 = arith.constant 0 : i32
    return %c0_i32, %c0_i32_0 : i32, i32
  }
  func.func @transform_6(%arg0: i32) -> (i32, i32) {
    %c0_i32 = arith.constant 0 : i32
    %c0_i32_0 = arith.constant 0 : i32
    %c0_i32_1 = arith.constant 0 : i32
    return %c0_i32, %c0_i32_0 : i32, i32
  }
  func.func @transform_7(%arg0: i32) -> (i32, i32) {
    %c0_i32 = arith.constant 0 : i32
    %c0_i32_0 = arith.constant 0 : i32
    return %c0_i32, %arg0 : i32, i32
  }
}

</mosaic_0001>

<llo_original>
// kernel: squeeze.1
$region0: #{squeeze.1}
  %s0 = inlined_call_operand.vmem [shape: f32[16], index: 0, kind: input, shape index: {}]
  %s1 = inlined_call_operand.hbm [shape: f32[2,8,1], index: 1, kind: output, shape index: {}]
  $region1: #{squeeze.1} parent=0
    #allocation0 [shape = 'u8[1024]{0}', space=vmem, size = 0x400, scoped, tag = 'operand span for operand 1']
    #allocation1 [shape = 's32[1]{0}', space=sflag, size = 0x4, scoped, tag = 'scoped memory for squeeze.1']
    #allocation2 [shape = 'u8[4096]{0}', space=vmem, size = 0x1000, scoped, tag = 'scoped mem for output reshape']
    #allocation3 [shape = 'u8[4096]{0}', space=vmem, size = 0x1000, scoped, tag = 'scoped mem for input reshape']
    %2 = vsyncpa [#allocation1], 0
    %s4 = sshllo.u32 0, 1
    %v5 = vld [vmem:[%s0] sm:%s4]
    %6 = vst [vmem:[#allocation3] sm:%s4] %v5
    %v7 = vld [vmem:[#allocation3] sm:$0x1]
    %vm8 = vcmask 64512
    %9 = vst.msk [vmem:[#allocation2] sm:$0x1] %vm8, %v7
    %v10 = vld [vmem:[#allocation3] sm:$0x1]
    %11 = vrot.lane.b32.xlu0 %v10, 120
    %v12 = vpop.permute.xlu0 %11
    %vm13 = vcmask 64512
    %s14 = scalar_lea.vmem [#allocation2], 1
    %15 = vst.msk [vmem:[%s14] sm:$0x1] %vm13, %v12
    %s17 = sshllo.u32 0, 2
    %v19 = vld [vmem:[#allocation2] sm:%s17]
    %s20 = sshllo.u32 0, 2
    %21 = vst [vmem:[#allocation0] sm:%s20] %v19
    %s23 = ssub.s32 32, 32
    %24 = vsyncadd [#allocation1], %s23
    %s26 = sshll.u32 [#allocation0], 4
    %s27 = int_to_ptr.vmem [resolvable:$true] %s26
    %29 = dma.vmem_to_hbm [thread:$0]  %s27, 32, %s1, [#allocation1]
    %30 = dma.done [#allocation1], 32
    %31 = vsyncpa [#allocation1], 1

// kernel: sdf_regression_forward.1
$region0: #{sdf_regression_forward.1}
  #allocation0 [shape = 'u32[]', space=smem, size = 0x4, offset = 0x4, fixed_abs, tag = 'smem constant byte address 0x4 - core index']
  #allocation1 [shape = 'u32[144,128]{1,0:T(1,128)}', space=vmem, size = 0x12000, scoped, tag = 'internal scratch']
  #allocation2 [shape = 'f32[1,1]{1,0:T(1,128)S(1)}', space=vmem, size = 0x200, scoped, tag = 'scoped memory for sdf_regression_forward.1']
  %s0 = inlined_call_operand.vmem [shape: bf16[32,128], index: 0, kind: input, shape index: {}]
  %s1 = inlined_call_operand.vmem [shape: bf16[32,32], index: 1, kind: input, shape index: {}]
  %s2 = inlined_call_operand.vmem [shape: f32[32,1], index: 2, kind: input, shape index: {}]
  %s3 = inlined_call_operand.vmem [shape: bf16[32,32], index: 3, kind: input, shape index: {}]
  %s4 = inlined_call_operand.vmem [shape: f32[32,1], index: 4, kind: input, shape index: {}]
  %s5 = inlined_call_operand.vmem [shape: bf16[1,32], index: 5, kind: input, shape index: {}]
  %s6 = inlined_call_operand.<no memory space> [shape: f32[1,1], index: 6, kind: input, shape index: {}]
  %s7 = inlined_call_operand.vmem [shape: f32[1,128], index: 7, kind: output, shape index: {}]
  %s8 = sld [smem:[#allocation0]]
  $region38: #{sdf_regression_forward.1} parent=0
    _
  %s10 = ssub.s32 1, %s8
  %s11 = scalar_select 0, %s10, %s8
  %v12 = vstv %s6
  %13 = vst [vmem:[#allocation2] sm:$0x1] %v12
  // Predicated region
  $region2: #{sdf_regression_forward.1} parent=0 // pred_check
    _
  $region3: #{sdf_regression_forward.1} parent=0 // pred_check_branch
    %15 = sbr.rel (0) target = $region5
  $region4: #{sdf_regression_forward.1} parent=0 // pred_region
    _
  $region5: #{sdf_regression_forward.1} parent=0 // pred_fallthru
    _
  // Predicated region
  $region6: #{sdf_regression_forward.1} parent=0 // pred_check
    _
  $region7: #{sdf_regression_forward.1} parent=0 // pred_check_branch
    %17 = sbr.rel (0) target = $region9
  $region8: #{sdf_regression_forward.1} parent=0 // pred_region
    _
  $region9: #{sdf_regression_forward.1} parent=0 // pred_fallthru
    _
  // Predicated region
  $region10: #{sdf_regression_forward.1} parent=0 // pred_check
    _
  $region11: #{sdf_regression_forward.1} parent=0 // pred_check_branch
    %19 = sbr.rel (0) target = $region13
  $region12: #{sdf_regression_forward.1} parent=0 // pred_region
    _
  $region13: #{sdf_regression_forward.1} parent=0 // pred_fallthru
    _
  // Predicated region
  $region14: #{sdf_regression_forward.1} parent=0 // pred_check
    _
  $region15: #{sdf_regression_forward.1} parent=0 // pred_check_branch
    %21 = sbr.rel (0) target = $region17
  $region16: #{sdf_regression_forward.1} parent=0 // pred_region
    _
  $region17: #{sdf_regression_forward.1} parent=0 // pred_fallthru
    _
  // Predicated region
  $region18: #{sdf_regression_forward.1} parent=0 // pred_check
    _
  $region19: #{sdf_regression_forward.1} parent=0 // pred_check_branch
    %23 = sbr.rel (0) target = $region21
  $region20: #{sdf_regression_forward.1} parent=0 // pred_region
    _
  $region21: #{sdf_regression_forward.1} parent=0 // pred_fallthru
    _
  // Predicated region
  $region22: #{sdf_regression_forward.1} parent=0 // pred_check
    _
  $region23: #{sdf_regression_forward.1} parent=0 // pred_check_branch
    %25 = sbr.rel (0) target = $region25
  $region24: #{sdf_regression_forward.1} parent=0 // pred_region
    _
  $region25: #{sdf_regression_forward.1} parent=0 // pred_fallthru
    _
  // Predicated region
  $region26: #{sdf_regression_forward.1} parent=0 // pred_check
    _
  $region27: #{sdf_regression_forward.1} parent=0 // pred_check_branch
    %27 = sbr.rel (0) target = $region29
  $region28: #{sdf_regression_forward.1} parent=0 // pred_region
    _
  $region29: #{sdf_regression_forward.1} parent=0 // pred_fallthru
    _
  %v29 = vld [vmem:[%s1] sm:$0xf]
  %v30 = vld [vmem:[%s1 + $0x4] sm:$0xf]
  %v31 = vld [vmem:[%s1 + $0x8] sm:$0xf]
  %v32 = vld [vmem:[%s1 + $0xc] sm:$0xf]
  %v33 = vld [vmem:[%s2] sm:$0xff]
  %v34 = vld [vmem:[%s2 + $0x8] sm:$0xff]
  %v35 = vld [vmem:[%s2 + $0x10] sm:$0xff]
  %v36 = vld [vmem:[%s2 + $0x18] sm:$0xff]
  %v37 = vld [vmem:[%s3] sm:$0xf]
  %v38 = vld [vmem:[%s3 + $0x4] sm:$0xf]
  %v39 = vld [vmem:[%s3 + $0x8] sm:$0xf]
  %v40 = vld [vmem:[%s3 + $0xc] sm:$0xf]
  %v41 = vld [vmem:[%s4] sm:$0xff]
  %v42 = vld [vmem:[%s4 + $0x8] sm:$0xff]
  %v43 = vld [vmem:[%s4 + $0x10] sm:$0xff]
  %v44 = vld [vmem:[%s4 + $0x18] sm:$0xff]
  %v45 = vld [vmem:[%s5] sm:$0x1]
  %v46 = vld [vmem:[#allocation2] sm:$0x1]
  %v47 = vld [vmem:[%s0] sm:$0xf]
  %v48 = vld [vmem:[%s0 + $0x4] sm:$0xf]
  %v49 = vld [vmem:[%s0 + $0x8] sm:$0xf]
  %v50 = vld [vmem:[%s0 + $0xc] sm:$0xf]
  %52 = vset.pattern.permute.xlu0 0
  %53 = vperm.xlu0 %52, %v33
  %v54 = vpop.permute.xlu0 %53
  %57 = vset.pattern.permute.xlu0 0
  %58 = vperm.xlu0 %57, %v34
  %v59 = vpop.permute.xlu0 %58
  %62 = vset.pattern.permute.xlu0 0
  %63 = vperm.xlu0 %62, %v35
  %v64 = vpop.permute.xlu0 %63
  %67 = vset.pattern.permute.xlu0 0
  %68 = vperm.xlu0 %67, %v36
  %v69 = vpop.permute.xlu0 %68
  %v75 = vunpack.c.l.b16 %v29
  %v76 = vunpack.c.l.b16 %v30
  %v77 = vunpack.c.l.b16 %v31
  %v78 = vunpack.c.l.b16 %v32
  %v79 = vpack.c.b16 %v76, %v75
  %v80 = vpack.c.b16 %v78, %v77
  %v85 = vunpack.c.l.b16 %v47
  %v86 = vunpack.c.l.b16 %v48
  %v87 = vunpack.c.l.b16 %v49
  %v88 = vunpack.c.l.b16 %v50
  %v89 = vpack.c.b16 %v86, %v85
  %v90 = vpack.c.b16 %v88, %v87
  %vm93 = vcmask 261120
  %v95 = vsel %vm93, %v79, 0
  %v98 = vsel %vm93, %v80, 0
  %100 = vmatprep.subr.bf16.mxu0 0
  %101 = vmatpush1.bf16.msra.mxu0 %v89
  %102 = vmatprep.subr.bf16.mxu0 0
  %103 = vmatpush1.bf16.msra.mxu0 %v90
  %104 = vmatprep.subr.bf16.mxu0 0
  %105 = vmatpush1.bf16.msra.mxu0 0
  %106 = vmatprep.subr.bf16.mxu0 0
  %107 = vmatpush1.bf16.msra.mxu0 0
  %108 = vmatprep.subr.bf16.mxu0 0
  %109 = vmatpush1.bf16.msra.mxu0 0
  %110 = vmatprep.subr.bf16.mxu0 0
  %111 = vmatpush1.bf16.msra.mxu0 0
  %112 = vmatprep.subr.bf16.mxu0 0
  %113 = vmatpush1.bf16.msra.mxu0 0
  %114 = vmatprep.subr.bf16.mxu0 0
  %115 = vmatpush1.bf16.msra.mxu0 0
  %116 = vmatprep.subr.bf16.mxu0 0
  %117 = vmatpush1.bf16.msra.mxu0 0
  %118 = vmatprep.subr.bf16.mxu0 0
  %119 = vmatpush1.bf16.msra.mxu0 0
  %120 = vmatprep.subr.bf16.mxu0 0
  %121 = vmatpush1.bf16.msra.mxu0 0
  %122 = vmatprep.subr.bf16.mxu0 0
  %123 = vmatpush1.bf16.msra.mxu0 0
  %124 = vmatprep.subr.bf16.mxu0 0
  %125 = vmatpush1.bf16.msra.mxu0 0
  %126 = vmatprep.subr.bf16.mxu0 0
  %127 = vmatpush1.bf16.msra.mxu0 0
  %128 = vmatprep.subr.bf16.mxu0 0
  %129 = vmatpush1.bf16.msra.mxu0 0
  %130 = vmatprep.subr.bf16.mxu0 0
  %131 = vmatpush1.bf16.msra.mxu0 0
  %132 = vmatprep.mubr.bf16.mxu0 0
  %133 = vmatmul.mubr.bf16.gmra.mrb[0].mxu0 %v95
  %v134 = vpop.f32.mrb[0].mxu0
  %v135 = vadd.f32 %v54, %v134
  %v136 = vpop.f32.mrb[0].mxu0
  %v137 = vpop.f32.mrb[0].mxu0
  %v138 = vadd.f32 %v59, %v137
  %v139 = vpop.f32.mrb[0].mxu0
  %140 = vmatprep.mubr.bf16.mxu0 0
  %141 = vmatmul.mubr.bf16.gmra.mrb[0].mxu0 %v98
  %v142 = vpop.f32.mrb[0].mxu0
  %v143 = vadd.f32 %v64, %v142
  %v144 = vpop.f32.mrb[0].mxu0
  %v145 = vpop.f32.mrb[0].mxu0
  %v146 = vadd.f32 %v69, %v145
  %v147 = vpop.f32.mrb[0].mxu0
  %148 = vdwg.mxu0
  %v149 = vmax.f32 %v135, 0.0
  %v150 = vmax.f32 %v138, 0.0
  %v151 = vmax.f32 %v143, 0.0
  %v152 = vmax.f32 %v146, 0.0
  %v153 = vpack.c.bf16 %v150, %v149
  %v154 = vpack.c.bf16 %v152, %v151
  %156 = vset.pattern.permute.xlu0 0
  %157 = vperm.xlu0 %156, %v41
  %v158 = vpop.permute.xlu0 %157
  %161 = vset.pattern.permute.xlu0 0
  %162 = vperm.xlu0 %161, %v42
  %v163 = vpop.permute.xlu0 %162
  %166 = vset.pattern.permute.xlu0 0
  %167 = vperm.xlu0 %166, %v43
  %v168 = vpop.permute.xlu0 %167
  %171 = vset.pattern.permute.xlu0 0
  %172 = vperm.xlu0 %171, %v44
  %v173 = vpop.permute.xlu0 %172
  %v179 = vunpack.c.l.b16 %v37
  %v180 = vunpack.c.l.b16 %v38
  %v181 = vunpack.c.l.b16 %v39
  %v182 = vunpack.c.l.b16 %v40
  %v183 = vpack.c.b16 %v180, %v179
  %v184 = vpack.c.b16 %v182, %v181
  %v186 = vsel %vm93, %v183, 0
  %v189 = vsel %vm93, %v184, 0
  %191 = vmatprep.subr.bf16.mxu0 0
  %192 = vmatpush1.bf16.msra.mxu0 %v153
  %193 = vmatprep.subr.bf16.mxu0 0
  %194 = vmatpush1.bf16.msra.mxu0 %v154
  %195 = vmatprep.subr.bf16.mxu0 0
  %196 = vmatpush1.bf16.msra.mxu0 0
  %197 = vmatprep.subr.bf16.mxu0 0
  %198 = vmatpush1.bf16.msra.mxu0 0
  %199 = vmatprep.subr.bf16.mxu0 0
  %200 = vmatpush1.bf16.msra.mxu0 0
  %201 = vmatprep.subr.bf16.mxu0 0
  %202 = vmatpush1.bf16.msra.mxu0 0
  %203 = vmatprep.subr.bf16.mxu0 0
  %204 = vmatpush1.bf16.msra.mxu0 0
  %205 = vmatprep.subr.bf16.mxu0 0
  %206 = vmatpush1.bf16.msra.mxu0 0
  %207 = vmatprep.subr.bf16.mxu0 0
  %208 = vmatpush1.bf16.msra.mxu0 0
  %209 = vmatprep.subr.bf16.mxu0 0
  %210 = vmatpush1.bf16.msra.mxu0 0
  %211 = vmatprep.subr.bf16.mxu0 0
  %212 = vmatpush1.bf16.msra.mxu0 0
  %213 = vmatprep.subr.bf16.mxu0 0
  %214 = vmatpush1.bf16.msra.mxu0 0
  %215 = vmatprep.subr.bf16.mxu0 0
  %216 = vmatpush1.bf16.msra.mxu0 0
  %217 = vmatprep.subr.bf16.mxu0 0
  %218 = vmatpush1.bf16.msra.mxu0 0
  %219 = vmatprep.subr.bf16.mxu0 0
  %220 = vmatpush1.bf16.msra.mxu0 0
  %221 = vmatprep.subr.bf16.mxu0 0
  %222 = vmatpush1.bf16.msra.mxu0 0
  %223 = vmatprep.mubr.bf16.mxu0 0
  %224 = vmatmul.mubr.bf16.gmra.mrb[0].mxu0 %v186
  %v225 = vpop.f32.mrb[0].mxu0
  %v226 = vadd.f32 %v158, %v225
  %v227 = vpop.f32.mrb[0].mxu0
  %v228 = vpop.f32.mrb[0].mxu0
  %v229 = vadd.f32 %v163, %v228
  %v230 = vpop.f32.mrb[0].mxu0
  %231 = vmatprep.mubr.bf16.mxu0 0
  %232 = vmatmul.mubr.bf16.gmra.mrb[0].mxu0 %v189
  %v233 = vpop.f32.mrb[0].mxu0
  %v234 = vadd.f32 %v168, %v233
  %v235 = vpop.f32.mrb[0].mxu0
  %v236 = vpop.f32.mrb[0].mxu0
  %v237 = vadd.f32 %v173, %v236
  %v238 = vpop.f32.mrb[0].mxu0
  %239 = vdwg.mxu0
  %v240 = vmax.f32 %v226, 0.0
  %v241 = vmax.f32 %v229, 0.0
  %v242 = vmax.f32 %v234, 0.0
  %v243 = vmax.f32 %v237, 0.0
  %v244 = vpack.c.bf16 %v241, %v240
  %v245 = vpack.c.bf16 %v243, %v242
  %247 = vset.pattern.permute.xlu0 0
  %248 = vperm.xlu0 %247, %v46
  %v249 = vpop.permute.xlu0 %248
  %v251 = vlaneseq
  %v252 = vshrl.u32 %v251, 7
  %v253 = vsub.s32 0, %v252
  %v254 = vrot.slane %v249, %v253
  %v256 = vsel %vm93, %v45, 0
  %258 = vmatprep.subr.bf16.mxu0 0
  %259 = vmatpush1.bf16.msra.mxu0 %v244
  %260 = vmatprep.subr.bf16.mxu0 0
  %261 = vmatpush1.bf16.msra.mxu0 %v245
  %262 = vmatprep.subr.bf16.mxu0 0
  %263 = vmatpush1.bf16.msra.mxu0 0
  %264 = vmatprep.subr.bf16.mxu0 0
  %265 = vmatpush1.bf16.msra.mxu0 0
  %266 = vmatprep.subr.bf16.mxu0 0
  %267 = vmatpush1.bf16.msra.mxu0 0
  %268 = vmatprep.subr.bf16.mxu0 0
  %269 = vmatpush1.bf16.msra.mxu0 0
  %270 = vmatprep.subr.bf16.mxu0 0
  %271 = vmatpush1.bf16.msra.mxu0 0
  %272 = vmatprep.subr.bf16.mxu0 0
  %273 = vmatpush1.bf16.msra.mxu0 0
  %274 = vmatprep.subr.bf16.mxu0 0
  %275 = vmatpush1.bf16.msra.mxu0 0
  %276 = vmatprep.subr.bf16.mxu0 0
  %277 = vmatpush1.bf16.msra.mxu0 0
  %278 = vmatprep.subr.bf16.mxu0 0
  %279 = vmatpush1.bf16.msra.mxu0 0
  %280 = vmatprep.subr.bf16.mxu0 0
  %281 = vmatpush1.bf16.msra.mxu0 0
  %282 = vmatprep.subr.bf16.mxu0 0
  %283 = vmatpush1.bf16.msra.mxu0 0
  %284 = vmatprep.subr.bf16.mxu0 0
  %285 = vmatpush1.bf16.msra.mxu0 0
  %286 = vmatprep.subr.bf16.mxu0 0
  %287 = vmatpush1.bf16.msra.mxu0 0
  %288 = vmatprep.subr.bf16.mxu0 0
  %289 = vmatpush1.bf16.msra.mxu0 0
  %290 = vmatprep.mubr.bf16.mxu0 0
  %291 = vmatmul.mubr.bf16.gmra.mrb[0].mxu0 %v256
  %v292 = vpop.f32.mrb[0].mxu0
  %v293 = vadd.f32 %v254, %v292
  %v294 = vpop.f32.mrb[0].mxu0
  %v295 = vpop.f32.mrb[0].mxu0
  %v296 = vpop.f32.mrb[0].mxu0
  %297 = vdwg.mxu0
  %298 = vst [vmem:[%s7] sm:$0x1] %v293
  // Predicated region
  $region30: #{sdf_regression_forward.1} parent=0 // pred_check
    _
  $region31: #{sdf_regression_forward.1} parent=0 // pred_check_branch
    %300 = sbr.rel (0) target = $region33
  $region32: #{sdf_regression_forward.1} parent=0 // pred_region
    _
  $region33: #{sdf_regression_forward.1} parent=0 // pred_fallthru
    _
  // Predicated region
  $region34: #{sdf_regression_forward.1} parent=0 // pred_check
    _
  $region35: #{sdf_regression_forward.1} parent=0 // pred_check_branch
    %302 = sbr.rel (0) target = $region37
  $region36: #{sdf_regression_forward.1} parent=0 // pred_region
    _
  $region37: #{sdf_regression_forward.1} parent=0 // pred_fallthru
    _

</llo_original>
